<compile_context>
chip_gen: v7x
topology: tpu7x:2x2x1
jax: 0.10.0
libtpu: 0.0.40
codegen_flags: <defaults>
</compile_context>

<pallas_src>
import jax
import jax.numpy as jnp
from jax.experimental import pallas as pl
from jax.experimental.pallas import tpu as pltpu


def _linear_kernel(x_ref, p_ref, o_ref):
    # x_ref: (B, IN); p_ref: (IN + B, OUT) = [W^T ; bias replicated to B rows]
    B, IN = x_ref.shape
    x = x_ref[...]

    # Start the accumulator from the pre-replicated bias rows: no in-kernel bias
    # broadcast, and it seeds the FMA chain for free.
    y = p_ref[IN:IN + B, :]

    # Unrolled K=IN (=3) contraction on the VPU; MXU deliberately skipped at this size.
    for k in range(IN):  # static trace-time unroll
        y = y + x[:, k:k + 1] * p_ref[k:k + 1, :]

    o_ref[...] = y.astype(o_ref.dtype)


def _linear_forward(x, packed):
    B, IN = x.shape
    OUT = packed.shape[1]

    flops = 2 * B * IN * OUT
    bytes_accessed = 4 * (B * IN + packed.shape[0] * OUT + B * OUT)

    return pl.pallas_call(
        _linear_kernel,
        out_shape=jax.ShapeDtypeStruct((B, OUT), jnp.float32),
        in_specs=[
            pl.BlockSpec(memory_space=pltpu.VMEM),   # x: one small DMA
            pl.BlockSpec(memory_space=pltpu.VMEM),   # packed [W^T ; bias]: one small DMA
        ],
        out_specs=pl.BlockSpec(memory_space=pltpu.VMEM),
        cost_estimate=pl.CostEstimate(
            flops=flops, transcendentals=0, bytes_accessed=bytes_accessed
        ),
    )(x, packed)


def make_test_net_forward(weight, bias, batch_size):
    """Build the forward fn.  All host-side layout work (transpose, bias replication,
    operand packing) happens exactly once here, not per call."""
    out_features, in_features = weight.shape

    w_t = jnp.asarray(weight, jnp.float32).T                                   # (IN, OUT)
    b_rep = jnp.tile(jnp.asarray(bias, jnp.float32)[None, :], (batch_size, 1))  # (B, OUT)
    packed = jnp.concatenate([w_t, b_rep], axis=0)                              # (IN+B, OUT)

    @jax.jit
    def forward(x):
        return _linear_forward(x, packed)

    return forward


if __name__ == "__main__":
    key = jax.random.PRNGKey(0)
    kx, kw, kb = jax.random.split(key, 3)

    B, IN, OUT = 8, 3, 4

    # Deterministic params mimicking nn.Linear's U(-1/sqrt(in), 1/sqrt(in)) init,
    # weight kept in torch layout (out_features, in_features).
    bound = 1.0 / jnp.sqrt(jnp.float32(IN))
    weight = jax.random.uniform(kw, (OUT, IN), jnp.float32, -bound, bound)
    bias = jax.random.uniform(kb, (OUT,), jnp.float32, -bound, bound)

    x = jax.random.normal(kx, (B, IN), jnp.float32)

    forward = make_test_net_forward(weight, bias, batch_size=B)
    out = jax.block_until_ready(forward(x))

    # Sanity check against plain-JAX reference (same math as torch: x @ W^T + b).
    ref = x @ weight.T + bias
    assert out.shape == (B, OUT)
    assert jnp.allclose(out, ref, atol=1e-5, rtol=1e-5)

    print("KERNEL_OK")
</pallas_src>

<mosaic_0001>
module attributes {stable_mosaic.version = 11 : i64} {
  func.func @_linear_kernel(%arg0: memref<8x3xf32, #tpu.memory_space<vmem>>, %arg1: memref<11x4xf32, #tpu.memory_space<vmem>>, %arg2: memref<8x4xf32, #tpu.memory_space<vmem>>) attributes {dimension_semantics = [], scalar_prefetch = 0 : i64, scratch_operands = 0 : i64, tpu.core_type = #tpu.core_type<tc>} {
    %c0 = arith.constant 0 : index
    %c0_0 = arith.constant 0 : index
    %0 = vector.load %arg0[%c0, %c0_0] : memref<8x3xf32, #tpu.memory_space<vmem>>, vector<8x3xf32>
    %c3 = arith.constant 3 : index
    %c0_1 = arith.constant 0 : index
    %1 = vector.load %arg1[%c3, %c0_1] : memref<11x4xf32, #tpu.memory_space<vmem>>, vector<8x4xf32>
    %2 = vector.extract_strided_slice %0 {offsets = [0, 0], sizes = [8, 1], strides = [1, 1]} : vector<8x3xf32> to vector<8x1xf32>
    %c0_2 = arith.constant 0 : index
    %c0_3 = arith.constant 0 : index
    %3 = vector.load %arg1[%c0_2, %c0_3] : memref<11x4xf32, #tpu.memory_space<vmem>>, vector<1x4xf32>
    %4 = vector.broadcast %2 : vector<8x1xf32> to vector<8x4xf32>
    %5 = vector.broadcast %3 : vector<1x4xf32> to vector<8x4xf32>
    %6 = arith.mulf %4, %5 : vector<8x4xf32>
    %7 = arith.addf %1, %6 : vector<8x4xf32>
    %8 = vector.extract_strided_slice %0 {offsets = [0, 1], sizes = [8, 1], strides = [1, 1]} : vector<8x3xf32> to vector<8x1xf32>
    %c1 = arith.constant 1 : index
    %c0_4 = arith.constant 0 : index
    %9 = vector.load %arg1[%c1, %c0_4] : memref<11x4xf32, #tpu.memory_space<vmem>>, vector<1x4xf32>
    %10 = vector.broadcast %8 : vector<8x1xf32> to vector<8x4xf32>
    %11 = vector.broadcast %9 : vector<1x4xf32> to vector<8x4xf32>
    %12 = arith.mulf %10, %11 : vector<8x4xf32>
    %13 = arith.addf %7, %12 : vector<8x4xf32>
    %14 = vector.extract_strided_slice %0 {offsets = [0, 2], sizes = [8, 1], strides = [1, 1]} : vector<8x3xf32> to vector<8x1xf32>
    %c2 = arith.constant 2 : index
    %c0_5 = arith.constant 0 : index
    %15 = vector.load %arg1[%c2, %c0_5] : memref<11x4xf32, #tpu.memory_space<vmem>>, vector<1x4xf32>
    %16 = vector.broadcast %14 : vector<8x1xf32> to vector<8x4xf32>
    %17 = vector.broadcast %15 : vector<1x4xf32> to vector<8x4xf32>
    %18 = arith.mulf %16, %17 : vector<8x4xf32>
    %19 = arith.addf %13, %18 : vector<8x4xf32>
    %c0_6 = arith.constant 0 : index
    %c0_7 = arith.constant 0 : index
    %20 = vector.load %arg2[%c0_6, %c0_7] : memref<8x4xf32, #tpu.memory_space<vmem>>, vector<8x4xf32>
    tpu.vector_store %arg2[%c0_6, %c0_7], %19 {strides = array<i32>} : memref<8x4xf32, #tpu.memory_space<vmem>>, vector<8x4xf32>,
    return
  }
}

</mosaic_0001>

<llo_original>
// kernel: forward.1
$region0: #{forward.1}
  #allocation0 [shape = 'u32[]', space=smem, size = 0x4, offset = 0x4, fixed_abs, tag = 'smem constant byte address 0x4 - core index']
  #allocation1 [shape = 'u32[144,128]{1,0:T(1,128)}', space=vmem, size = 0x12000, scoped, tag = 'internal scratch']
  %s0 = inlined_call_operand.vmem [shape: f32[8,3], index: 0, kind: input, shape index: {}]
  %s1 = inlined_call_operand.hbm [shape: f32[11,4], index: 1, kind: input, shape index: {}]
  %s2 = inlined_call_operand.vmem [shape: f32[8,4], index: 2, kind: output, shape index: {}]
  %s3 = sld [smem:[#allocation0]]
  $region22: #{forward.1} parent=0
    _
  %s5 = ssub.s32 1, %s3
  %s6 = scalar_select 0, %s5, %s3
  $region1: #{forward.1} parent=0
    #allocation2 [shape = 'u8[8192]{0}', space=vmem, size = 0x2000, scoped, tag = 'input window, operand 1, single buffered']
    #allocation3 [shape = 's32[1]{0}', space=sflag, size = 0x4, scoped, tag = 'scoped memory for forward.1']
    %7 = vsyncpa [#allocation3], 0
    // Predicated region
    $region2: #{forward.1} parent=1 // pred_check
      _
    $region3: #{forward.1} parent=1 // pred_check_branch
      %9 = sbr.rel (0) target = $region5
    $region4: #{forward.1} parent=1 // pred_region
      _
    $region5: #{forward.1} parent=1 // pred_fallthru
      _
    // Predicated region
    $region6: #{forward.1} parent=1 // pred_check
      _
    $region7: #{forward.1} parent=1 // pred_check_branch
      %11 = sbr.rel (0) target = $region9
    $region8: #{forward.1} parent=1 // pred_region
      %s13 = ssub.s32 256, 256
      %14 = vsyncadd [#allocation3], %s13
      %s15 = sshll.u32 [#allocation2], 4
      %s16 = int_to_ptr.vmem [resolvable:$true] %s15
      %21 = dma.hbm_to_vmem [thread:$0]  %s1, 256, %s16, [#allocation3], 128, 128, 8
    $region9: #{forward.1} parent=1 // pred_fallthru
      _
    // Predicated region
    $region10: #{forward.1} parent=1 // pred_check
      _
    $region11: #{forward.1} parent=1 // pred_check_branch
      %23 = sbr.rel (0) target = $region13
    $region12: #{forward.1} parent=1 // pred_region
      %24 = dma.done [#allocation3], 256
    $region13: #{forward.1} parent=1 // pred_fallthru
      _
    %v25 = vld [vmem:[%s0] sm:$0xff]
    %v26 = vld [vmem:[#allocation2 + $0x3] sm:$0xff]
    %v27 = vld [vmem:[#allocation2] sm:$0x1]
    %29 = vset.pattern.permute.xlu0 0
    %30 = vperm.xlu0 %29, %v25
    %v31 = vpop.permute.xlu0 %30
    %v33 = vlaneseq
    %v34 = vshrl.u32 %v33, 7
    %v35 = vsub.s32 0, %v34
    %v36 = vrot.slane %v27, %v35
    %v37 = vmul.f32 %v31, %v36
    %v38 = vadd.f32 %v26, %v37
    %v39 = vld [vmem:[#allocation2 + $0x1] sm:$0x1]
    %40 = vset.pattern.permute.xlu0 1
    %41 = vperm.xlu0 %40, %v25
    %v42 = vpop.permute.xlu0 %41
    %v44 = vlaneseq
    %v45 = vshrl.u32 %v44, 7
    %v46 = vsub.s32 0, %v45
    %v47 = vrot.slane %v39, %v46
    %v48 = vmul.f32 %v42, %v47
    %v49 = vadd.f32 %v38, %v48
    %v50 = vld [vmem:[#allocation2 + $0x2] sm:$0x1]
    %51 = vset.pattern.permute.xlu0 2
    %52 = vperm.xlu0 %51, %v25
    %v53 = vpop.permute.xlu0 %52
    %v55 = vlaneseq
    %v56 = vshrl.u32 %v55, 7
    %v57 = vsub.s32 0, %v56
    %v58 = vrot.slane %v50, %v57
    %v59 = vmul.f32 %v53, %v58
    %v60 = vadd.f32 %v49, %v59
    %vm61 = vcmask 31744
    %62 = vst.msk [vmem:[%s2] sm:$0xff] %vm61, %v60
    // Predicated region
    $region14: #{forward.1} parent=1 // pred_check
      _
    $region15: #{forward.1} parent=1 // pred_check_branch
      %64 = sbr.rel (0) target = $region17
    $region16: #{forward.1} parent=1 // pred_region
      _
    $region17: #{forward.1} parent=1 // pred_fallthru
      _
    // Predicated region
    $region18: #{forward.1} parent=1 // pred_check
      _
    $region19: #{forward.1} parent=1 // pred_check_branch
      %66 = sbr.rel (0) target = $region21
    $region20: #{forward.1} parent=1 // pred_region
      _
    $region21: #{forward.1} parent=1 // pred_fallthru
      _
    %67 = vsyncpa [#allocation3], 1

</llo_original>
